<compile_context>
chip_gen: v5e
topology: v5e:2x2
jax: 0.10.0
libtpu: 0.0.40
codegen_flags: <defaults>
</compile_context>

<pallas_src>
import functools

import jax
import jax.numpy as jnp
from jax import lax
from jax.experimental import pallas as pl
from jax.experimental.pallas import tpu as pltpu


def _ds_conv_kernel(x_ref, w_ref, b_ref, o_ref, acc_ref, patch_ref, *, cpad, wq, ts):
    """One grid step = one padded input depth plane (= one kd tap of one output plane).

    x_ref    : (4*cpad, Hq*Wq)   bf16 phase-split input depth plane (lanes = flat h*w)
    w_ref    : (3, Cout, 9*cpad) bf16 stacked-K weight, VMEM resident
    b_ref    : (Cout, 1)         f32 bias
    o_ref    : (Cout, ts)        ts = Ho*Wq (lane-dense output tile)
    acc_ref  : (Cout, ts)  f32   accumulator over the kd grid axis
    patch_ref: (9*cpad, ts) bf16 stacked-K patch for the 9 (kh, kw) taps
    """
    kd = pl.program_id(2)

    @pl.when(kd == 0)
    def _init():
        acc_ref[...] = jnp.zeros_like(acc_ref)

    # Gather the 9 (kh, kw) taps of this depth plane into the stacked-K patch.  Every tap
    # is a contiguous (cpad, ts) slice of one parity sub-plane (static offsets).
    for t in range(9):
        kh, kw = t // 3, t % 3
        phase = (kh % 2) * 2 + (kw % 2)      # (rh, rw) parity sub-plane
        off = (kh // 2) * wq + (kw // 2)     # flat spatial shift inside that sub-plane
        patch_ref[t * cpad:(t + 1) * cpad, :] = (
            x_ref[phase * cpad:(phase + 1) * cpad, off:off + ts])

    # One wide-K MXU contraction for all 9 taps; f32 accumulation over kd in VMEM.
    acc_ref[...] += jnp.dot(w_ref[kd], patch_ref[...],
                            preferred_element_type=jnp.float32)

    @pl.when(kd == 2)
    def _finalize():
        o_ref[...] = (acc_ref[...] + b_ref[...]).astype(o_ref.dtype)


def downsampling_forward(x, weight, bias):
    """Conv3d(C, 2C, kernel_size=3, stride=2, padding=1) forward.

    x:      (N, C, D, H, W)   float32
    weight: (2C, C, 3, 3, 3)  float32  (PyTorch Conv3d layout)
    bias:   (2C,)             float32
    returns (N, 2C, Do, Ho, Wo) float32
    """
    N, C, D, H, W = x.shape
    Cout = weight.shape[0]
    Do = (D - 1) // 2 + 1
    Ho = (H - 1) // 2 + 1
    Wo = (W - 1) // 2 + 1

    # Padded / phase-split geometry.
    Dp = 2 * Do + 1            # padded depth extent indexed by the grid (2*od + kd)
    Hq = Ho + 2                # per-parity H extent (1 halo row + 1 slack row)
    Wq = Wo + 1                # per-parity W extent (1 halo col -> 1 junk output col)
    Sin = Hq * Wq              # flattened per-parity plane
    TS = Ho * Wq               # flattened output tile (junk cols cropped in glue)
    Cp = ((C + 7) // 8) * 8    # channel pad -> sublane-aligned parity row groups

    out_dtype = x.dtype

    # ---- glue: bf16 cast, pad + phase-split relayout (x-sized copy, no im2col blow-up) --
    xb = x.astype(jnp.bfloat16)
    xp = jnp.pad(
        xb,
        ((0, 0), (0, Cp - C),
         (1, Dp - 1 - D), (1, 2 * Hq - 1 - H), (1, 2 * Wq - 1 - W)),
    )                                                   # (N, Cp, Dp, 2Hq, 2Wq)
    xp = xp.reshape(N, Cp, Dp, Hq, 2, Wq, 2)
    xp = jnp.transpose(xp, (0, 2, 4, 6, 1, 3, 5))       # (N, Dp, rh, rw, Cp, Hq, Wq)
    xp = xp.reshape(N, Dp, 4 * Cp, Sin)

    # weight (Cout, C, 3, 3, 3) -> stacked-K (3 kd, Cout, 9*Cp) bf16, matching patch order.
    w_r = jnp.transpose(weight, (2, 0, 3, 4, 1))        # (kd, Cout, kh, kw, C)
    w_r = jnp.pad(w_r, ((0, 0), (0, 0), (0, 0), (0, 0), (0, Cp - C)))
    w_r = w_r.reshape(3, Cout, 9 * Cp).astype(jnp.bfloat16)
    b_r = bias.astype(jnp.float32).reshape(Cout, 1)

    kernel = functools.partial(_ds_conv_kernel, cpad=Cp, wq=Wq, ts=TS)

    out_k = pl.pallas_call(
        kernel,
        out_shape=jax.ShapeDtypeStruct((N, Do, Cout, TS), out_dtype),
        grid_spec=pltpu.PrefetchScalarGridSpec(
            num_scalar_prefetch=0,
            grid=(N, Do, 3),
            in_specs=[
                # One padded depth plane (all 4 hw parities) per step.  The plane index
                # 2*od + kd repeats at od boundaries, so Pallas skips the redundant
                # re-fetch and x is streamed from HBM roughly once.
                pl.BlockSpec((None, None, 4 * Cp, Sin),
                             lambda n, od, kd: (n, 2 * od + kd, 0, 0)),
                # Full stacked-K weight, constant index -> stays resident in VMEM.
                pl.BlockSpec((3, Cout, 9 * Cp), lambda n, od, kd: (0, 0, 0)),
                pl.BlockSpec((Cout, 1), lambda n, od, kd: (0, 0)),
            ],
            out_specs=pl.BlockSpec((None, None, Cout, TS),
                                   lambda n, od, kd: (n, od, 0, 0)),
            scratch_shapes=[
                pltpu.VMEM((Cout, TS), jnp.float32),       # f32 accumulator over kd
                pltpu.VMEM((9 * Cp, TS), jnp.bfloat16),    # stacked-K patch
            ],
        ),
        compiler_params=pltpu.CompilerParams(
            dimension_semantics=("parallel", "parallel", "arbitrary"),
            vmem_limit_bytes=32 * 1024 * 1024,
        ),
    )(xp, w_r, b_r)

    # ---- glue: drop the junk output columns and restore NC'D'H'W' (one fused XLA copy) --
    out = out_k.reshape(N, Do, Cout, Ho, Wq)[..., :Wo]      # (N, Do, Cout, Ho, Wo)
    return jnp.transpose(out, (0, 2, 1, 3, 4))              # (N, Cout, Do, Ho, Wo)


def _run_case(key, N, C, D, H, W, atol, rtol):
    kx, kw_key, kb = jax.random.split(key, 3)
    Cout = 2 * C

    x = jax.random.normal(kx, (N, C, D, H, W), dtype=jnp.float32)
    fan_in = C * 3 * 3 * 3
    weight = jax.random.normal(kw_key, (Cout, C, 3, 3, 3), dtype=jnp.float32) * (fan_in ** -0.5)
    bias = jax.random.normal(kb, (Cout,), dtype=jnp.float32) * 0.01

    out = jax.jit(downsampling_forward)(x, weight, bias)
    out = jax.block_until_ready(out)

    ref = lax.conv_general_dilated(
        x, weight,
        window_strides=(2, 2, 2),
        padding=((1, 1), (1, 1), (1, 1)),
        dimension_numbers=("NCDHW", "OIDHW", "NCDHW"),
    ) + bias.reshape(1, Cout, 1, 1, 1)

    Do, Ho, Wo = (D - 1) // 2 + 1, (H - 1) // 2 + 1, (W - 1) // 2 + 1
    assert out.shape == (N, Cout, Do, Ho, Wo), out.shape
    max_err = float(jnp.max(jnp.abs(out - ref)))
    # bf16 operands (f32 accumulation) -> loosened tolerance vs the f32 reference.
    assert jnp.allclose(out, ref, atol=atol, rtol=rtol), max_err
    return max_err


if __name__ == "__main__":
    key = jax.random.PRNGKey(0)
    k1, k2 = jax.random.split(key)

    # Main case (even sizes, C not a multiple of 8 -> exercises the channel-pad path).
    _run_case(k1, N=2, C=4, D=16, H=16, W=16, atol=3e-2, rtol=3e-2)
    # Odd spatial dims (regression test for the padding / halo / junk-column arithmetic).
    _run_case(k2, N=1, C=4, D=9, H=11, W=13, atol=3e-2, rtol=3e-2)

    print("KERNEL_OK")
</pallas_src>

<mosaic_0001>
module attributes {stable_mosaic.version = 11 : i64} {
  func.func @_ds_conv_kernel(%arg0: i32, %arg1: i32, %arg2: i32, %arg3: memref<1x1x32x90xbf16, #tpu.memory_space<vmem>>, %arg4: memref<3x8x72xbf16, #tpu.memory_space<vmem>>, %arg5: memref<8x1xf32, #tpu.memory_space<vmem>>, %arg6: memref<1x1x8x72xf32, #tpu.memory_space<vmem>>, %arg7: memref<8x72xf32, #tpu.memory_space<vmem>>, %arg8: memref<72x72xbf16, #tpu.memory_space<vmem>>) attributes {dimension_semantics = [#tpu.dimension_semantics<parallel>, #tpu.dimension_semantics<parallel>, #tpu.dimension_semantics<arbitrary>], iteration_bounds = array<i64: 2, 8, 3>, scalar_prefetch = 0 : i64, scratch_operands = 2 : i64, tpu.core_type = #tpu.core_type<tc>, window_params = [{transform_indices = @transform_0, window_bounds = array<i64: 1, 1, 32, 90>}, {pipeline_mode = #tpu.pipeline_mode<synchronous>, transform_indices = @transform_1, window_bounds = array<i64: 3, 8, 72>}, {pipeline_mode = #tpu.pipeline_mode<synchronous>, transform_indices = @transform_2, window_bounds = array<i64: 8, 1>}, {transform_indices = @transform_3, window_bounds = array<i64: 1, 1, 8, 72>}]} {
    %c0_i32 = arith.constant 0 : i32
    %0 = arith.cmpi eq, %arg2, %c0_i32 : i32
    %1 = arith.extui %0 : i1 to i32
    %c0_i32_0 = arith.constant 0 : i32
    %2 = arith.cmpi ne, %1, %c0_i32_0 : i32
    scf.if %2 {
      %cst_52 = arith.constant 0.000000e+00 : f32
      %41 = vector.broadcast %cst_52 : f32 to vector<8x72xf32>
      %c0_53 = arith.constant 0 : index
      %c0_54 = arith.constant 0 : index
      %42 = vector.load %arg7[%c0_53, %c0_54] : memref<8x72xf32, #tpu.memory_space<vmem>>, vector<8x72xf32>
      tpu.vector_store %arg7[%c0_53, %c0_54], %41 {strides = array<i32>} : memref<8x72xf32, #tpu.memory_space<vmem>>, vector<8x72xf32>,
    } else {
    }
    %c0 = arith.constant 0 : index
    %c0_1 = arith.constant 0 : index
    %c0_2 = arith.constant 0 : index
    %c0_3 = arith.constant 0 : index
    %3 = vector.load %arg3[%c0, %c0_1, %c0_2, %c0_3] : memref<1x1x32x90xbf16, #tpu.memory_space<vmem>>, vector<1x1x8x72xbf16>
    %4 = vector.shape_cast %3 : vector<1x1x8x72xbf16> to vector<8x72xbf16>
    %c0_4 = arith.constant 0 : index
    %c0_5 = arith.constant 0 : index
    %5 = vector.load %arg8[%c0_4, %c0_5] : memref<72x72xbf16, #tpu.memory_space<vmem>>, vector<8x72xbf16>
    tpu.vector_store %arg8[%c0_4, %c0_5], %4 {strides = array<i32>} : memref<72x72xbf16, #tpu.memory_space<vmem>>, vector<8x72xbf16>,
    %c0_6 = arith.constant 0 : index
    %c0_7 = arith.constant 0 : index
    %c8 = arith.constant 8 : index
    %c0_8 = arith.constant 0 : index
    %6 = vector.load %arg3[%c0_6, %c0_7, %c8, %c0_8] : memref<1x1x32x90xbf16, #tpu.memory_space<vmem>>, vector<1x1x8x72xbf16>
    %7 = vector.shape_cast %6 : vector<1x1x8x72xbf16> to vector<8x72xbf16>
    %c8_9 = arith.constant 8 : index
    %c0_10 = arith.constant 0 : index
    %8 = vector.load %arg8[%c8_9, %c0_10] : memref<72x72xbf16, #tpu.memory_space<vmem>>, vector<8x72xbf16>
    tpu.vector_store %arg8[%c8_9, %c0_10], %7 {strides = array<i32>} : memref<72x72xbf16, #tpu.memory_space<vmem>>, vector<8x72xbf16>,
    %c0_11 = arith.constant 0 : index
    %c0_12 = arith.constant 0 : index
    %c0_13 = arith.constant 0 : index
    %c1 = arith.constant 1 : index
    %9 = vector.load %arg3[%c0_11, %c0_12, %c0_13, %c1] : memref<1x1x32x90xbf16, #tpu.memory_space<vmem>>, vector<1x1x8x72xbf16>
    %10 = vector.shape_cast %9 : vector<1x1x8x72xbf16> to vector<8x72xbf16>
    %c16 = arith.constant 16 : index
    %c0_14 = arith.constant 0 : index
    %11 = vector.load %arg8[%c16, %c0_14] : memref<72x72xbf16, #tpu.memory_space<vmem>>, vector<8x72xbf16>
    tpu.vector_store %arg8[%c16, %c0_14], %10 {strides = array<i32>} : memref<72x72xbf16, #tpu.memory_space<vmem>>, vector<8x72xbf16>,
    %c0_15 = arith.constant 0 : index
    %c0_16 = arith.constant 0 : index
    %c16_17 = arith.constant 16 : index
    %c0_18 = arith.constant 0 : index
    %12 = vector.load %arg3[%c0_15, %c0_16, %c16_17, %c0_18] : memref<1x1x32x90xbf16, #tpu.memory_space<vmem>>, vector<1x1x8x72xbf16>
    %13 = vector.shape_cast %12 : vector<1x1x8x72xbf16> to vector<8x72xbf16>
    %c24 = arith.constant 24 : index
    %c0_19 = arith.constant 0 : index
    %14 = vector.load %arg8[%c24, %c0_19] : memref<72x72xbf16, #tpu.memory_space<vmem>>, vector<8x72xbf16>
    tpu.vector_store %arg8[%c24, %c0_19], %13 {strides = array<i32>} : memref<72x72xbf16, #tpu.memory_space<vmem>>, vector<8x72xbf16>,
    %c0_20 = arith.constant 0 : index
    %c0_21 = arith.constant 0 : index
    %c24_22 = arith.constant 24 : index
    %c0_23 = arith.constant 0 : index
    %15 = vector.load %arg3[%c0_20, %c0_21, %c24_22, %c0_23] : memref<1x1x32x90xbf16, #tpu.memory_space<vmem>>, vector<1x1x8x72xbf16>
    %16 = vector.shape_cast %15 : vector<1x1x8x72xbf16> to vector<8x72xbf16>
    %c32 = arith.constant 32 : index
    %c0_24 = arith.constant 0 : index
    %17 = vector.load %arg8[%c32, %c0_24] : memref<72x72xbf16, #tpu.memory_space<vmem>>, vector<8x72xbf16>
    tpu.vector_store %arg8[%c32, %c0_24], %16 {strides = array<i32>} : memref<72x72xbf16, #tpu.memory_space<vmem>>, vector<8x72xbf16>,
    %c0_25 = arith.constant 0 : index
    %c0_26 = arith.constant 0 : index
    %c16_27 = arith.constant 16 : index
    %c1_28 = arith.constant 1 : index
    %18 = vector.load %arg3[%c0_25, %c0_26, %c16_27, %c1_28] : memref<1x1x32x90xbf16, #tpu.memory_space<vmem>>, vector<1x1x8x72xbf16>
    %19 = vector.shape_cast %18 : vector<1x1x8x72xbf16> to vector<8x72xbf16>
    %c40 = arith.constant 40 : index
    %c0_29 = arith.constant 0 : index
    %20 = vector.load %arg8[%c40, %c0_29] : memref<72x72xbf16, #tpu.memory_space<vmem>>, vector<8x72xbf16>
    tpu.vector_store %arg8[%c40, %c0_29], %19 {strides = array<i32>} : memref<72x72xbf16, #tpu.memory_space<vmem>>, vector<8x72xbf16>,
    %c0_30 = arith.constant 0 : index
    %c0_31 = arith.constant 0 : index
    %c0_32 = arith.constant 0 : index
    %c9 = arith.constant 9 : index
    %21 = vector.load %arg3[%c0_30, %c0_31, %c0_32, %c9] : memref<1x1x32x90xbf16, #tpu.memory_space<vmem>>, vector<1x1x8x72xbf16>
    %22 = vector.shape_cast %21 : vector<1x1x8x72xbf16> to vector<8x72xbf16>
    %c48 = arith.constant 48 : index
    %c0_33 = arith.constant 0 : index
    %23 = vector.load %arg8[%c48, %c0_33] : memref<72x72xbf16, #tpu.memory_space<vmem>>, vector<8x72xbf16>
    tpu.vector_store %arg8[%c48, %c0_33], %22 {strides = array<i32>} : memref<72x72xbf16, #tpu.memory_space<vmem>>, vector<8x72xbf16>,
    %c0_34 = arith.constant 0 : index
    %c0_35 = arith.constant 0 : index
    %c8_36 = arith.constant 8 : index
    %c9_37 = arith.constant 9 : index
    %24 = vector.load %arg3[%c0_34, %c0_35, %c8_36, %c9_37] : memref<1x1x32x90xbf16, #tpu.memory_space<vmem>>, vector<1x1x8x72xbf16>
    %25 = vector.shape_cast %24 : vector<1x1x8x72xbf16> to vector<8x72xbf16>
    %c56 = arith.constant 56 : index
    %c0_38 = arith.constant 0 : index
    %26 = vector.load %arg8[%c56, %c0_38] : memref<72x72xbf16, #tpu.memory_space<vmem>>, vector<8x72xbf16>
    tpu.vector_store %arg8[%c56, %c0_38], %25 {strides = array<i32>} : memref<72x72xbf16, #tpu.memory_space<vmem>>, vector<8x72xbf16>,
    %c0_39 = arith.constant 0 : index
    %c0_40 = arith.constant 0 : index
    %c0_41 = arith.constant 0 : index
    %c10 = arith.constant 10 : index
    %27 = vector.load %arg3[%c0_39, %c0_40, %c0_41, %c10] : memref<1x1x32x90xbf16, #tpu.memory_space<vmem>>, vector<1x1x8x72xbf16>
    %28 = vector.shape_cast %27 : vector<1x1x8x72xbf16> to vector<8x72xbf16>
    %c64 = arith.constant 64 : index
    %c0_42 = arith.constant 0 : index
    %29 = vector.load %arg8[%c64, %c0_42] : memref<72x72xbf16, #tpu.memory_space<vmem>>, vector<8x72xbf16>
    tpu.vector_store %arg8[%c64, %c0_42], %28 {strides = array<i32>} : memref<72x72xbf16, #tpu.memory_space<vmem>>, vector<8x72xbf16>,
    %c0_43 = arith.constant 0 : index
    %c0_44 = arith.constant 0 : index
    %30 = vector.load %arg7[%c0_43, %c0_44] : memref<8x72xf32, #tpu.memory_space<vmem>>, vector<8x72xf32>
    %31 = arith.index_cast %arg2 : i32 to index
    %c0_45 = arith.constant 0 : index
    %c0_46 = arith.constant 0 : index
    %32 = vector.load %arg4[%31, %c0_45, %c0_46] : memref<3x8x72xbf16, #tpu.memory_space<vmem>>, vector<1x8x72xbf16>
    %33 = vector.shape_cast %32 : vector<1x8x72xbf16> to vector<8x72xbf16>
    %c0_47 = arith.constant 0 : index
    %c0_48 = arith.constant 0 : index
    %34 = vector.load %arg8[%c0_47, %c0_48] : memref<72x72xbf16, #tpu.memory_space<vmem>>, vector<72x72xbf16>
    %cst = arith.constant dense<0.000000e+00> : vector<8x72xf32>
    %35 = tpu.matmul %33, %34, %cst {dimension_numbers = #tpu.dot_dimension_numbers<[1], [0], [0], [1], [0, 0, 1, 1], [], []>} : vector<8x72xbf16>, vector<72x72xbf16>, vector<8x72xf32> -> vector<8x72xf32>
    %36 = arith.addf %30, %35 : vector<8x72xf32>
    %c0_49 = arith.constant 0 : index
    %c0_50 = arith.constant 0 : index
    %37 = vector.load %arg7[%c0_49, %c0_50] : memref<8x72xf32, #tpu.memory_space<vmem>>, vector<8x72xf32>
    tpu.vector_store %arg7[%c0_49, %c0_50], %36 {strides = array<i32>} : memref<8x72xf32, #tpu.memory_space<vmem>>, vector<8x72xf32>,
    %c2_i32 = arith.constant 2 : i32
    %38 = arith.cmpi eq, %arg2, %c2_i32 : i32
    %39 = arith.extui %38 : i1 to i32
    %c0_i32_51 = arith.constant 0 : i32
    %40 = arith.cmpi ne, %39, %c0_i32_51 : i32
    scf.if %40 {
      %c0_52 = arith.constant 0 : index
      %c0_53 = arith.constant 0 : index
      %41 = vector.load %arg7[%c0_52, %c0_53] : memref<8x72xf32, #tpu.memory_space<vmem>>, vector<8x72xf32>
      %c0_54 = arith.constant 0 : index
      %c0_55 = arith.constant 0 : index
      %42 = vector.load %arg5[%c0_54, %c0_55] : memref<8x1xf32, #tpu.memory_space<vmem>>, vector<8x1xf32>
      %43 = vector.broadcast %42 : vector<8x1xf32> to vector<8x72xf32>
      %44 = arith.addf %41, %43 : vector<8x72xf32>
      %c0_56 = arith.constant 0 : index
      %c0_57 = arith.constant 0 : index
      %c0_58 = arith.constant 0 : index
      %c0_59 = arith.constant 0 : index
      %45 = vector.load %arg6[%c0_56, %c0_57, %c0_58, %c0_59] : memref<1x1x8x72xf32, #tpu.memory_space<vmem>>, vector<1x1x8x72xf32>
      %46 = vector.shape_cast %45 : vector<1x1x8x72xf32> to vector<8x72xf32>
      %47 = vector.shape_cast %44 : vector<8x72xf32> to vector<1x1x8x72xf32>
      tpu.vector_store %arg6[%c0_56, %c0_57, %c0_58, %c0_59], %47 {strides = array<i32>} : memref<1x1x8x72xf32, #tpu.memory_space<vmem>>, vector<1x1x8x72xf32>,
    } else {
    }
    return
  }
  func.func @transform_0(%arg0: i32, %arg1: i32, %arg2: i32) -> (i32, i32, i32, i32) {
    %c2_i32 = arith.constant 2 : i32
    %0 = arith.muli %c2_i32, %arg1 : i32
    %1 = arith.addi %0, %arg2 : i32
    %c0_i32 = arith.constant 0 : i32
    %c0_i32_0 = arith.constant 0 : i32
    %c0_i32_1 = arith.constant 0 : i32
    return %arg0, %1, %c0_i32, %c0_i32_0 : i32, i32, i32, i32
  }
  func.func @transform_1(%arg0: i32, %arg1: i32, %arg2: i32) -> (i32, i32, i32) {
    %c0_i32 = arith.constant 0 : i32
    %c0_i32_0 = arith.constant 0 : i32
    %c0_i32_1 = arith.constant 0 : i32
    %c0_i32_2 = arith.constant 0 : i32
    return %c0_i32, %c0_i32_0, %c0_i32_1 : i32, i32, i32
  }
  func.func @transform_2(%arg0: i32, %arg1: i32, %arg2: i32) -> (i32, i32) {
    %c0_i32 = arith.constant 0 : i32
    %c0_i32_0 = arith.constant 0 : i32
    %c0_i32_1 = arith.constant 0 : i32
    return %c0_i32, %c0_i32_0 : i32, i32
  }
  func.func @transform_3(%arg0: i32, %arg1: i32, %arg2: i32) -> (i32, i32, i32, i32) {
    %c0_i32 = arith.constant 0 : i32
    %c0_i32_0 = arith.constant 0 : i32
    %c0_i32_1 = arith.constant 0 : i32
    return %arg0, %arg1, %c0_i32, %c0_i32_0 : i32, i32, i32, i32
  }
}

</mosaic_0001>

<llo_original>
// kernel: downsampling_forward.1
$region0: #{downsampling_forward.1}
  #allocation0 [shape = 'u32[]', space=smem, size = 0x4, offset = 0x4, fixed_abs, tag = 'smem constant byte address 0x4 - core index']
  #allocation1 [shape = 'u32[72,128]{1,0:T(1,128)}', space=vmem, size = 0x9000, scoped, tag = 'internal scratch']
  #allocation2 [shape = 'f32[8,72]{1,0:T(8,128)}', space=vmem, size = 0x1000, scoped, tag = 'scratch operand']
  #allocation3 [shape = 'bf16[72,72]{1,0:T(8,128)(2,1)}', space=vmem, size = 0x4800, scoped, tag = 'scratch operand']
  %s0 = inlined_call_operand.vmem [shape: bf16[2,17,32,90], index: 0, kind: input, shape index: {}]
  %s1 = inlined_call_operand.vmem [shape: bf16[3,8,72], index: 1, kind: input, shape index: {}]
  %s2 = inlined_call_operand.vmem [shape: f32[8,1], index: 2, kind: input, shape index: {}]
  %s3 = inlined_call_operand.vmem [shape: f32[2,8,8,72], index: 3, kind: output, shape index: {}]
  %s4 = sld [smem:[#allocation0]]
  $region53: #{downsampling_forward.1} parent=0
    _
  %s6 = ssub.s32 1, %s4
  %s7 = scalar_select 0, %s6, %s4
  loop: start=0, step=1, limit=50
  $region2: #{downsampling_forward.1} parent=0 // loop_pre_header
    _
  $region3: #{downsampling_forward.1} parent=0 // loop_header
    %s9 = sphi 0, %s13
    %p10 = scmp.ge.s32.totalorder %s9, 50
    %s16 = sphi 0, %s35
    %s17 = sphi 0, %s31
    %s18 = sphi 0, %s27
    %s19 = sphi 0, %s16
    %s20 = sphi 0, %s17
    %s21 = sphi 0, %s18
    %s22 = sphi 0, %s19
    %s23 = sphi 0, %s20
    %s24 = sphi 0, %s21
    %s44 = sphi 0, %s46
    %s47 = sphi 0, %s44
    %s48 = sphi 0, %s47
    %s64 = sphi 0, %s48
    %s68 = sphi 0, %s68
    %s70 = sphi 0, %s68
    %s71 = sphi 0, %s70
    %s85 = sphi 0, %s71
    %s89 = sphi 0, %s89
    %s91 = sphi 0, %s89
    %s92 = sphi 0, %s91
    %s106 = sphi 0, %s92
    %s114 = sphi 0, %s116
    %s117 = sphi 0, %s114
    %s118 = sphi 0, %s117
    %s134 = sphi 0, %s118
  $region4: #{downsampling_forward.1} parent=0 // loop_header_branch
    %12 = sbr.rel (%p10) target = $region8
  $region5: #{downsampling_forward.1} parent=0 // loop_body
    %s14 = ssub.s32 %s9, 1
    %s15 = ssub.s32 %s9, 2
    %s25 = sadd.s32 1, %s18
    %p26 = scmp.ge.s32.totalorder %s25, 3
    %s27 = scalar_select %p26, 0, %s25
    %s28 = sadd.s32 1, %s17
    %s29 = scalar_select %p26, %s28, %s17
    %p30 = scmp.ge.s32.totalorder %s29, 8
    %s31 = scalar_select %p30, 0, %s29
    %s32 = sadd.s32 1, %s16
    %s33 = scalar_select %p30, %s32, %s16
    %p34 = scmp.ge.s32.totalorder %s33, 2
    %s35 = scalar_select %p34, 0, %s33
    %s36 = smul.u32 %s17, 2
    %s37 = sadd.s32 %s36, %s18
    %s38 = smul.u32 %s31, 2
    %s39 = sadd.s32 %s38, %s27
    %s40 = ssub.s32 %s16, %s35
    %s41 = ssub.s32 %s37, %s39
    %s42 = sor.u32 %s40, %s41
    %p43 = scmp.eq.s32.totalorder %s42, 0
    %s45 = sadd.s32 %s44, 1
    %s46 = scalar_select %p43, %s44, %s45
    %p49 = pneg %p43
    %p50 = scmp.eq.s32.totalorder %s9, 47
    %p51 = por %p49, %p50
    %p52 = scmp.ne.s32.totalorder %s44, %s47
    %p53 = scmp.eq.s32.totalorder %s9, 0
    %p54 = por %p52, %p53
    %p55 = scmp.ne.s32.totalorder %s44, %s47
    %p56 = scmp.eq.s32.totalorder %s14, 47
    %p57 = por %p55, %p56
    %p58 = scmp.ne.s32.totalorder %s47, %s48
    %p59 = scmp.eq.s32.totalorder %s14, 0
    %p60 = por %p58, %p59
    %p61 = scmp.ne.s32.totalorder %s47, %s48
    %p62 = scmp.eq.s32.totalorder %s15, 47
    %p63 = por %p61, %p62
    %p65 = scmp.ne.s32.totalorder %s48, %s64
    %p66 = scmp.eq.s32.totalorder %s15, 0
    %p67 = por %p65, %p66
    %s69 = sadd.s32 %s68, 1
    %p72 = scmp.eq.s32.totalorder %s9, 47
    %p73 = scmp.ne.s32.totalorder %s68, %s70
    %p74 = scmp.eq.s32.totalorder %s9, 0
    %p75 = por %p73, %p74
    %p76 = scmp.ne.s32.totalorder %s68, %s70
    %p77 = scmp.eq.s32.totalorder %s14, 47
    %p78 = por %p76, %p77
    %p79 = scmp.ne.s32.totalorder %s70, %s71
    %p80 = scmp.eq.s32.totalorder %s14, 0
    %p81 = por %p79, %p80
    %p82 = scmp.ne.s32.totalorder %s70, %s71
    %p83 = scmp.eq.s32.totalorder %s15, 47
    %p84 = por %p82, %p83
    %p86 = scmp.ne.s32.totalorder %s71, %s85
    %p87 = scmp.eq.s32.totalorder %s15, 0
    %p88 = por %p86, %p87
    %s90 = sadd.s32 %s89, 1
    %p93 = scmp.eq.s32.totalorder %s9, 47
    %p94 = scmp.ne.s32.totalorder %s89, %s91
    %p95 = scmp.eq.s32.totalorder %s9, 0
    %p96 = por %p94, %p95
    %p97 = scmp.ne.s32.totalorder %s89, %s91
    %p98 = scmp.eq.s32.totalorder %s14, 47
    %p99 = por %p97, %p98
    %p100 = scmp.ne.s32.totalorder %s91, %s92
    %p101 = scmp.eq.s32.totalorder %s14, 0
    %p102 = por %p100, %p101
    %p103 = scmp.ne.s32.totalorder %s91, %s92
    %p104 = scmp.eq.s32.totalorder %s15, 47
    %p105 = por %p103, %p104
    %p107 = scmp.ne.s32.totalorder %s92, %s106
    %p108 = scmp.eq.s32.totalorder %s15, 0
    %p109 = por %p107, %p108
    %s110 = ssub.s32 %s16, %s35
    %s111 = ssub.s32 %s17, %s31
    %s112 = sor.u32 %s110, %s111
    %p113 = scmp.eq.s32.totalorder %s112, 0
    %s115 = sadd.s32 %s114, 1
    %s116 = scalar_select %p113, %s114, %s115
    %p119 = pneg %p113
    %p120 = scmp.eq.s32.totalorder %s9, 47
    %p121 = por %p119, %p120
    %p122 = scmp.ne.s32.totalorder %s114, %s117
    %p123 = scmp.eq.s32.totalorder %s9, 0
    %p124 = por %p122, %p123
    %p125 = scmp.ne.s32.totalorder %s114, %s117
    %p126 = scmp.eq.s32.totalorder %s14, 47
    %p127 = por %p125, %p126
    %p128 = scmp.ne.s32.totalorder %s117, %s118
    %p129 = scmp.eq.s32.totalorder %s14, 0
    %p130 = por %p128, %p129
    %p131 = scmp.ne.s32.totalorder %s117, %s118
    %p132 = scmp.eq.s32.totalorder %s15, 47
    %p133 = por %p131, %p132
    %p135 = scmp.ne.s32.totalorder %s118, %s134
    %p136 = scmp.eq.s32.totalorder %s15, 0
    %p137 = por %p135, %p136
    %p138 = scmp.le.s32.totalorder 1, %s9
    %p139 = scmp.lt.s32.totalorder %s9, 49
    %p140 = pnand %p138, %p139
    %p141 = pneg %p140
    // Predicated region
    $region9: #{downsampling_forward.1} parent=5 // pred_check
      _
    $region10: #{downsampling_forward.1} parent=5 // pred_check_branch
      %143 = sbr.rel (%p140) target = $region12
    $region11: #{downsampling_forward.1} parent=5 // pred_region
      %s144 = ssub.s32 %s9, 1
      // Predicated region
      $region13: #{downsampling_forward.1} parent=11 // pred_check
        %p145 = pneg %p81
      $region14: #{downsampling_forward.1} parent=11 // pred_check_branch
        %147 = sbr.rel (%p145) target = $region16
      $region15: #{downsampling_forward.1} parent=11 // pred_region
        _
      $region16: #{downsampling_forward.1} parent=11 // pred_fallthru
        _
      // Predicated region
      $region17: #{downsampling_forward.1} parent=11 // pred_check
        %p148 = pneg %p102
      $region18: #{downsampling_forward.1} parent=11 // pred_check_branch
        %150 = sbr.rel (%p148) target = $region20
      $region19: #{downsampling_forward.1} parent=11 // pred_region
        _
      $region20: #{downsampling_forward.1} parent=11 // pred_fallthru
        _
    $region12: #{downsampling_forward.1} parent=5 // pred_fallthru
      _
    %p151 = scmp.lt.s32.totalorder %s9, 48
    // Predicated region
    $region21: #{downsampling_forward.1} parent=5 // pred_check
      %p152 = pneg %p151
    $region22: #{downsampling_forward.1} parent=5 // pred_check_branch
      %154 = sbr.rel (%p152) target = $region24
    $region23: #{downsampling_forward.1} parent=5 // pred_region
      // Predicated region
      $region25: #{downsampling_forward.1} parent=23 // pred_check
        %p155 = pneg %p54
      $region26: #{downsampling_forward.1} parent=23 // pred_check_branch
        %157 = sbr.rel (%p155) target = $region28
      $region27: #{downsampling_forward.1} parent=23 // pred_region
        %s158 = smul.u32 %s17, 2
        %s159 = sadd.s32 %s158, %s18
        %p160 = scmp.lt.s32.totalorder %s16, 1
        %s161 = scalar_select %p160, %s16, 1
        %p162 = scmp.lt.s32.totalorder %s159, 16
        %s163 = scalar_select %p162, %s159, 16
        %s164 = smul.addr %s163, 4
        %s165 = smul.addr %s161, 68
        %s166 = sadd.s32 %s164, %s165
        %s167 = smul.addr %s166, 4
        %s168 = scalar_lea.vmem %s0, %s167
        %s169 = smul.u32 %s17, 2
        %s170 = sadd.s32 %s169, %s18
      $region28: #{downsampling_forward.1} parent=23 // pred_fallthru
        _
    $region24: #{downsampling_forward.1} parent=5 // pred_fallthru
      _
    %p171 = scmp.le.s32.totalorder 1, %s9
    %p172 = scmp.lt.s32.totalorder %s9, 49
    %p173 = pnand %p171, %p172
    %p174 = pneg %p173
    // Predicated region
    $region29: #{downsampling_forward.1} parent=5 // pred_check
      _
    $region30: #{downsampling_forward.1} parent=5 // pred_check_branch
      %176 = sbr.rel (%p173) target = $region32
    $region31: #{downsampling_forward.1} parent=5 // pred_region
      %s177 = ssub.s32 %s9, 1
      %s178 = smul.u32 %s20, 2
      %s179 = sadd.s32 %s178, %s21
      %p180 = scmp.lt.s32.totalorder %s19, 1
      %s181 = scalar_select %p180, %s19, 1
      %p182 = scmp.lt.s32.totalorder %s179, 16
      %s183 = scalar_select %p182, %s179, 16
      %s184 = smul.addr %s183, 4
      %s185 = smul.addr %s181, 68
      %s186 = sadd.s32 %s184, %s185
      %s187 = smul.addr %s186, 4
      %s188 = scalar_lea.vmem %s0, %s187
      %p189 = pneg %p60
      %p190 = pneg %p57
      %p191 = pneg %p81
      %p192 = pneg %p78
      %p193 = pneg %p102
      %p194 = pneg %p99
      %p195 = pneg %p130
      %p196 = pneg %p127
      %p197 = scmp.lt.s32.totalorder %s19, 1
      %s198 = scalar_select %p197, %s19, 1
      %p199 = scmp.lt.s32.totalorder %s20, 7
      %s200 = scalar_select %p199, %s20, 7
      %s201 = smul.addr %s198, 8
      %s202 = sadd.s32 %s200, %s201
      %s203 = smul.addr %s202, 8
      %s204 = scalar_lea.vmem %s3, %s203
      %s205 = smul.u32 %s20, 2
      %s206 = sadd.s32 %s205, %s21
      %p207 = scmp.lt.s32.totalorder %s19, 1
      %s208 = scalar_select %p207, %s19, 1
      %p209 = scmp.lt.s32.totalorder %s206, 16
      %s210 = scalar_select %p209, %s206, 16
      %s211 = smul.addr %s210, 4
      %s212 = smul.addr %s208, 68
      %s213 = sadd.s32 %s211, %s212
      %s214 = smul.addr %s213, 4
      %s215 = scalar_lea.vmem %s0, %s214
      %s216 = smul.u32 %s20, 2
      %s217 = sadd.s32 %s216, %s21
      %p218 = scmp.lt.s32.totalorder %s19, 1
      %s219 = scalar_select %p218, %s19, 1
      %p220 = scmp.lt.s32.totalorder %s20, 7
      %s221 = scalar_select %p220, %s20, 7
      %s222 = smul.addr %s219, 8
      %s223 = sadd.s32 %s221, %s222
      %s224 = smul.addr %s223, 8
      %s225 = scalar_lea.vmem %s3, %s224
      %p227 = scmp.eq.s32.totalorder %s21, 0
      // Predicated region
      $region33: #{downsampling_forward.1} parent=31 // pred_check
        %p228 = pneg %p227
      $region34: #{downsampling_forward.1} parent=31 // pred_check_branch
        %230 = sbr.rel (%p228) target = $region36
      $region35: #{downsampling_forward.1} parent=31 // pred_region
        %vm231 = vcmask 588800
        %232 = vst.msk [vmem:[#allocation2] sm:$0xff] %vm231, 0.0
      $region36: #{downsampling_forward.1} parent=31 // pred_fallthru
        _
      %v233 = vld [vmem:[%s215] sm:$0xf]
      %vm234 = vcmask 584704
      %235 = vst.msk [vmem:[#allocation3] sm:$0xf] %vm234, %v233
      %v236 = vld [vmem:[%s215 + $0x4] sm:$0xf]
      %237 = vst.msk [vmem:[#allocation3 + $0x4] sm:$0xf] %vm234, %v236
      %v238 = vld [vmem:[%s215] sm:$0xf]
      %240 = vrot.lane.b32.xlu0 %v238, 127
      %v241 = vpop.permute.xlu0 %240
      %243 = vst.msk [vmem:[#allocation3 + $0x8] sm:$0xf] %vm234, %v241
      %v244 = vld [vmem:[%s215 + $0x8] sm:$0xf]
      %245 = vst.msk [vmem:[#allocation3 + $0xc] sm:$0xf] %vm234, %v244
      %v246 = vld [vmem:[%s215 + $0xc] sm:$0xf]
      %247 = vst.msk [vmem:[#allocation3 + $0x10] sm:$0xf] %vm234, %v246
      %v248 = vld [vmem:[%s215 + $0x8] sm:$0xf]
      %250 = vrot.lane.b32.xlu0 %v248, 127
      %v251 = vpop.permute.xlu0 %250
      %253 = vst.msk [vmem:[#allocation3 + $0x14] sm:$0xf] %vm234, %v251
      %v254 = vld [vmem:[%s215] sm:$0xf]
      %256 = vrot.lane.b32.xlu0 %v254, 119
      %v257 = vpop.permute.xlu0 %256
      %259 = vst.msk [vmem:[#allocation3 + $0x18] sm:$0xf] %vm234, %v257
      %v260 = vld [vmem:[%s215 + $0x4] sm:$0xf]
      %262 = vrot.lane.b32.xlu0 %v260, 119
      %v263 = vpop.permute.xlu0 %262
      %265 = vst.msk [vmem:[#allocation3 + $0x1c] sm:$0xf] %vm234, %v263
      %v266 = vld [vmem:[%s215] sm:$0xf]
      %268 = vrot.lane.b32.xlu0 %v266, 118
      %v269 = vpop.permute.xlu0 %268
      %271 = vst.msk [vmem:[#allocation3 + $0x20] sm:$0xf] %vm234, %v269
      %v272 = vld [vmem:[#allocation2] sm:$0xff]
      %s273 = smul.addr %s21, 4
      %s274 = scalar_lea.vmem %s1, %s273
      %v275 = vld [vmem:[%s274] sm:$0xf]
      %v276 = vld [vmem:[#allocation3] sm:$0xf]
      %v277 = vld [vmem:[#allocation3 + $0x4] sm:$0xf]
      %v278 = vld [vmem:[#allocation3 + $0x8] sm:$0xf]
      %v279 = vld [vmem:[#allocation3 + $0xc] sm:$0xf]
      %v280 = vld [vmem:[#allocation3 + $0x10] sm:$0xf]
      %v281 = vld [vmem:[#allocation3 + $0x14] sm:$0xf]
      %v282 = vld [vmem:[#allocation3 + $0x18] sm:$0xf]
      %v283 = vld [vmem:[#allocation3 + $0x1c] sm:$0xf]
      %v284 = vld [vmem:[#allocation3 + $0x20] sm:$0xf]
      %v294 = vunpack.c.l.b16 %v276
      %v295 = vunpack.c.l.b16 %v277
      %v296 = vunpack.c.l.b16 %v278
      %v297 = vunpack.c.l.b16 %v279
      %v298 = vunpack.c.l.b16 %v280
      %v299 = vunpack.c.l.b16 %v281
      %v300 = vunpack.c.l.b16 %v282
      %v301 = vunpack.c.l.b16 %v283
      %v302 = vunpack.c.l.b16 %v284
      %v303 = vpack.c.b16 %v295, %v294
      %v304 = vpack.c.b16 %v297, %v296
      %v305 = vpack.c.b16 %v299, %v298
      %v306 = vpack.c.b16 %v301, %v300
      %v307 = vpack.c.b16 %v302, %v302
      %vm312 = vcmask 588800
      %v314 = vsel %vm312, %v275, 0
      %vm316 = vcmask 1043456
      %v318 = vsel %vm316, %v307, 0
      %320 = vmatpush.bf16.msra.mxu0 0
      %321 = vmatpush.bf16.msra.mxu0 0
      %322 = vmatpush.bf16.msra.mxu0 0
      %323 = vmatpush.bf16.msra.mxu0 %v318
      %324 = vmatpush.bf16.msra.mxu0 %v306
      %325 = vmatpush.bf16.msra.mxu0 %v305
      %326 = vmatpush.bf16.msra.mxu0 %v304
      %327 = vmatpush.bf16.msra.mxu0 %v303
      %328 = vmatmul.bf16.gmra.mxu0 %v314
      %v329 = vpop.f32.mrf.mxu0
      %v330 = vadd.f32 0.0, %v329
      %v331 = vpop.f32.mrf.mxu0
      %332 = vdwg.mxu0
      %v333 = vadd.f32 %v272, %v330
      %334 = vst.msk [vmem:[#allocation2] sm:$0xff] %vm312, %v333
      %p335 = scmp.eq.s32.totalorder %s21, 2
      // Predicated region
      $region37: #{downsampling_forward.1} parent=31 // pred_check
        %p336 = pneg %p335
      $region38: #{downsampling_forward.1} parent=31 // pred_check_branch
        %338 = sbr.rel (%p336) target = $region40
      $region39: #{downsampling_forward.1} parent=31 // pred_region
        %v339 = vld [vmem:[#allocation2] sm:$0xff]
        %v340 = vld [vmem:[%s2] sm:$0xff]
        %342 = vset.pattern.permute.xlu0 0
        %343 = vperm.xlu0 %342, %v340
        %v344 = vpop.permute.xlu0 %343
        %v346 = vadd.f32 %v339, %v344
        %347 = vst.msk [vmem:[%s225] sm:$0xff] %vm312, %v346
      $region40: #{downsampling_forward.1} parent=31 // pred_fallthru
        _
      %p348 = scmp.lt.s32.totalorder %s19, 1
      %s349 = scalar_select %p348, %s19, 1
      %p350 = scmp.lt.s32.totalorder %s20, 7
      %s351 = scalar_select %p350, %s20, 7
      %s352 = smul.addr %s349, 8
      %s353 = sadd.s32 %s351, %s352
      %s354 = smul.addr %s353, 8
      %s355 = scalar_lea.vmem %s3, %s354
      // Predicated region
      $region41: #{downsampling_forward.1} parent=31 // pred_check
        %p356 = pneg %p127
      $region42: #{downsampling_forward.1} parent=31 // pred_check_branch
        %358 = sbr.rel (%p356) target = $region44
      $region43: #{downsampling_forward.1} parent=31 // pred_region
        _
      $region44: #{downsampling_forward.1} parent=31 // pred_fallthru
        _
    $region32: #{downsampling_forward.1} parent=5 // pred_fallthru
      _
    %p359 = scmp.le.s32.totalorder 2, %s9
    // Predicated region
    $region45: #{downsampling_forward.1} parent=5 // pred_check
      %p360 = pneg %p359
    $region46: #{downsampling_forward.1} parent=5 // pred_check_branch
      %362 = sbr.rel (%p360) target = $region48
    $region47: #{downsampling_forward.1} parent=5 // pred_region
      %s363 = ssub.s32 %s9, 2
      // Predicated region
      $region49: #{downsampling_forward.1} parent=47 // pred_check
        %p364 = pneg %p133
      $region50: #{downsampling_forward.1} parent=47 // pred_check_branch
        %366 = sbr.rel (%p364) target = $region52
      $region51: #{downsampling_forward.1} parent=47 // pred_region
        %p367 = scmp.lt.s32.totalorder %s22, 1
        %s368 = scalar_select %p367, %s22, 1
        %p369 = scmp.lt.s32.totalorder %s23, 7
        %s370 = scalar_select %p369, %s23, 7
        %s371 = smul.addr %s368, 8
        %s372 = sadd.s32 %s370, %s371
        %s373 = smul.addr %s372, 8
        %s374 = scalar_lea.vmem %s3, %s373
      $region52: #{downsampling_forward.1} parent=47 // pred_fallthru
        _
    $region48: #{downsampling_forward.1} parent=5 // pred_fallthru
      _
  $region6: #{downsampling_forward.1} parent=0 // loop_footer
    %s13 = sadd.s32 1, %s9
  $region7: #{downsampling_forward.1} parent=0 // loop_footer_branch
    %8 = sbr.rel target = $region3
  $region8: #{downsampling_forward.1} parent=0 // loop_exit
    _

</llo_original>
